<compile_context>
chip_gen: v7x
topology: tpu7x:2x2x1
jax: 0.10.0
libtpu: 0.0.40
codegen_flags: <defaults>
</compile_context>

<pallas_src>
import jax
import jax.numpy as jnp
from jax.experimental import pallas as pl
from jax.experimental.pallas import tpu as pltpu


def pmish_kernel(beta_ref, inv_beta_ref, is_unit_ref, x_ref, o_ref):
    # beta_ref / inv_beta_ref: SMEM f32 scalars, is_unit_ref: SMEM int32 scalar.
    # x_ref / o_ref: VMEM tiles of shape (tile_rows, cols).
    x = x_ref[...].astype(jnp.float32)

    @pl.when(is_unit_ref[0] == 1)
    def _fast_mish():
        # beta == 1: tanh(softplus(x)) as a stable rational in a = exp(-|x|).
        #   x >= 0:  (2a + 1) / (2a^2 + 2a + 1)
        #   x <  0:  (a^2 + 2a) / (a^2 + 2a + 2)
        a = jnp.exp(-jnp.abs(x))
        a2 = a * a
        pos = x >= 0.0
        num = jnp.where(pos, 2.0 * a + 1.0, a2 + 2.0 * a)
        den = jnp.where(pos, 2.0 * a2 + 2.0 * a + 1.0, a2 + 2.0 * a + 2.0)
        o_ref[...] = (x * (num / den)).astype(o_ref.dtype)

    @pl.when(is_unit_ref[0] == 0)
    def _general():
        beta = beta_ref[0]
        inv_beta = inv_beta_ref[0]          # exact 1/beta, scalar (no per-elem rcp)
        bx = beta * x
        # numerically stable softplus: max(z, 0) + log1p(exp(-|z|))
        sp = jnp.maximum(bx, 0.0) + jnp.log1p(jnp.exp(-jnp.abs(bx)))
        o_ref[...] = (x * jnp.tanh(sp * inv_beta)).astype(o_ref.dtype)


def _round_up(n, m):
    return (n + m - 1) // m * m


def pmish(x, beta, *, tile_rows=512, cols=1024):
    """PMish over any shape/dtype; beta is a shape-(1,) learnable scalar.

    cols must be a multiple of 128.  Default (512, 1024) f32 tile = 2 MiB, so
    double-buffered in+out stays at ~8 MiB VMEM on every TPU generation.
    """
    assert cols % 128 == 0
    orig_shape = x.shape
    total = x.size
    assert total > 0

    rows = pl.cdiv(total, cols)
    # Shrink the tile for small inputs so tiny tensors aren't padded to 2 MiB.
    tile_rows = max(8, min(tile_rows, _round_up(rows, 8)))
    padded_rows = _round_up(rows, tile_rows)
    padded_total = padded_rows * cols

    xf = x.reshape(-1)
    if padded_total != total:
        xf = jnp.pad(xf, (0, padded_total - total))
    x2 = xf.reshape(padded_rows, cols)

    beta_f32 = beta.astype(jnp.float32).reshape(1)
    inv_beta = 1.0 / beta_f32                              # exact scalar reciprocal, once
    is_unit = (beta_f32 == 1.0).astype(jnp.int32)          # select fused Mish path

    grid = (padded_rows // tile_rows,)
    itemsize = jnp.dtype(x.dtype).itemsize
    cost = pl.CostEstimate(
        flops=10 * padded_total,
        transcendentals=3 * padded_total,
        bytes_accessed=2 * padded_total * itemsize,
    )

    out = pl.pallas_call(
        pmish_kernel,
        out_shape=jax.ShapeDtypeStruct((padded_rows, cols), x.dtype),
        grid=grid,
        in_specs=[
            pl.BlockSpec(memory_space=pltpu.MemorySpace.SMEM),   # beta
            pl.BlockSpec(memory_space=pltpu.MemorySpace.SMEM),   # 1/beta
            pl.BlockSpec(memory_space=pltpu.MemorySpace.SMEM),   # is_unit flag
            pl.BlockSpec((tile_rows, cols), lambda i: (i, 0)),   # x tile
        ],
        out_specs=pl.BlockSpec((tile_rows, cols), lambda i: (i, 0)),
        compiler_params=pltpu.CompilerParams(
            dimension_semantics=("parallel",)),
        cost_estimate=cost,
    )(beta_f32, inv_beta, is_unit, x2)

    return out.reshape(-1)[:total].reshape(orig_shape)


def pmish_ref(x, beta):
    xf = x.astype(jnp.float32)
    b = beta.astype(jnp.float32)[0]
    bx = b * xf
    sp = jnp.maximum(bx, 0.0) + jnp.log1p(jnp.exp(-jnp.abs(bx)))
    return (xf * jnp.tanh(sp / b)).astype(x.dtype)


if __name__ == "__main__":
    key = jax.random.PRNGKey(0)
    k1, k2 = jax.random.split(key)

    # NCHW input, as the PyTorch module would see (e.g. after a conv).
    x = jax.random.normal(k1, (2, 4, 16, 16), dtype=jnp.float32)
    beta1 = jnp.ones((1,), dtype=jnp.float32)   # nn.Parameter(torch.ones(1))
    out = jax.block_until_ready(pmish(x, beta1))
    ref = pmish_ref(x, beta1)
    assert out.shape == x.shape and out.dtype == x.dtype
    assert jnp.allclose(out, ref, atol=1e-5, rtol=1e-5)

    # Exercise the general (beta != 1) path and the padding path (odd shape).
    x2 = jax.random.normal(k2, (2, 3, 7, 5), dtype=jnp.float32)
    beta2 = jnp.array([1.5], dtype=jnp.float32)
    out2 = jax.block_until_ready(pmish(x2, beta2))
    ref2 = pmish_ref(x2, beta2)
    assert out2.shape == x2.shape and out2.dtype == x2.dtype
    assert jnp.allclose(out2, ref2, atol=1e-5, rtol=1e-5)

    print("KERNEL_OK")
</pallas_src>

<mosaic_0001>
module attributes {stable_mosaic.version = 11 : i64} {
  func.func @pmish_kernel(%arg0: i32, %arg1: memref<1xf32, #tpu.memory_space<smem>>, %arg2: memref<1xf32, #tpu.memory_space<smem>>, %arg3: memref<1xi32, #tpu.memory_space<smem>>, %arg4: memref<8x1024xf32, #tpu.memory_space<vmem>>, %arg5: memref<8x1024xf32, #tpu.memory_space<vmem>>) attributes {dimension_semantics = [#tpu.dimension_semantics<parallel>], iteration_bounds = array<i64: 1>, scalar_prefetch = 0 : i64, scratch_operands = 0 : i64, tpu.core_type = #tpu.core_type<tc>, window_params = [{transform_indices = @transform_0, window_bounds = array<i64: 1>}, {transform_indices = @transform_1, window_bounds = array<i64: 1>}, {transform_indices = @transform_2, window_bounds = array<i64: 1>}, {transform_indices = @transform_3, window_bounds = array<i64: 8, 1024>}, {transform_indices = @transform_4, window_bounds = array<i64: 8, 1024>}]} {
    %c0 = arith.constant 0 : index
    %c0_0 = arith.constant 0 : index
    %0 = vector.load %arg4[%c0, %c0_0] : memref<8x1024xf32, #tpu.memory_space<vmem>>, vector<8x1024xf32>
    %c0_1 = arith.constant 0 : index
    %1 = memref.load %arg3[%c0_1] : memref<1xi32, #tpu.memory_space<smem>>
    %c1_i32 = arith.constant 1 : i32
    %2 = arith.cmpi eq, %1, %c1_i32 : i32
    %3 = arith.extui %2 : i1 to i32
    %c0_i32 = arith.constant 0 : i32
    %4 = arith.cmpi ne, %3, %c0_i32 : i32
    scf.if %4 {
      %9 = math.absf %0 : vector<8x1024xf32>
      %cst = arith.constant 0.000000e+00 : f32
      %10 = vector.broadcast %cst : f32 to vector<8x1024xf32>
      %11 = arith.subf %10, %9 : vector<8x1024xf32>
      %12 = math.exp %11 : vector<8x1024xf32>
      %13 = arith.mulf %12, %12 : vector<8x1024xf32>
      %cst_5 = arith.constant 0.000000e+00 : f32
      %14 = vector.broadcast %cst_5 : f32 to vector<8x1024xf32>
      %15 = arith.cmpf oge, %0, %14 : vector<8x1024xf32>
      %cst_6 = arith.constant 2.000000e+00 : f32
      %16 = vector.broadcast %cst_6 : f32 to vector<8x1024xf32>
      %17 = arith.mulf %16, %12 : vector<8x1024xf32>
      %cst_7 = arith.constant 1.000000e+00 : f32
      %18 = vector.broadcast %cst_7 : f32 to vector<8x1024xf32>
      %19 = arith.addf %17, %18 : vector<8x1024xf32>
      %cst_8 = arith.constant 2.000000e+00 : f32
      %20 = vector.broadcast %cst_8 : f32 to vector<8x1024xf32>
      %21 = arith.mulf %20, %12 : vector<8x1024xf32>
      %22 = arith.addf %13, %21 : vector<8x1024xf32>
      %23 = arith.select %15, %19, %22 : vector<8x1024xi1>, vector<8x1024xf32>
      %cst_9 = arith.constant 2.000000e+00 : f32
      %24 = vector.broadcast %cst_9 : f32 to vector<8x1024xf32>
      %25 = arith.mulf %24, %13 : vector<8x1024xf32>
      %cst_10 = arith.constant 2.000000e+00 : f32
      %26 = vector.broadcast %cst_10 : f32 to vector<8x1024xf32>
      %27 = arith.mulf %26, %12 : vector<8x1024xf32>
      %28 = arith.addf %25, %27 : vector<8x1024xf32>
      %cst_11 = arith.constant 1.000000e+00 : f32
      %29 = vector.broadcast %cst_11 : f32 to vector<8x1024xf32>
      %30 = arith.addf %28, %29 : vector<8x1024xf32>
      %cst_12 = arith.constant 2.000000e+00 : f32
      %31 = vector.broadcast %cst_12 : f32 to vector<8x1024xf32>
      %32 = arith.mulf %31, %12 : vector<8x1024xf32>
      %33 = arith.addf %13, %32 : vector<8x1024xf32>
      %cst_13 = arith.constant 2.000000e+00 : f32
      %34 = vector.broadcast %cst_13 : f32 to vector<8x1024xf32>
      %35 = arith.addf %33, %34 : vector<8x1024xf32>
      %36 = arith.select %15, %30, %35 : vector<8x1024xi1>, vector<8x1024xf32>
      %37 = arith.divf %23, %36 : vector<8x1024xf32>
      %38 = arith.mulf %0, %37 : vector<8x1024xf32>
      %c0_14 = arith.constant 0 : index
      %c0_15 = arith.constant 0 : index
      %39 = vector.load %arg5[%c0_14, %c0_15] : memref<8x1024xf32, #tpu.memory_space<vmem>>, vector<8x1024xf32>
      tpu.vector_store %arg5[%c0_14, %c0_15], %38 {strides = array<i32>} : memref<8x1024xf32, #tpu.memory_space<vmem>>, vector<8x1024xf32>,
    } else {
    }
    %c0_2 = arith.constant 0 : index
    %5 = memref.load %arg3[%c0_2] : memref<1xi32, #tpu.memory_space<smem>>
    %c0_i32_3 = arith.constant 0 : i32
    %6 = arith.cmpi eq, %5, %c0_i32_3 : i32
    %7 = arith.extui %6 : i1 to i32
    %c0_i32_4 = arith.constant 0 : i32
    %8 = arith.cmpi ne, %7, %c0_i32_4 : i32
    scf.if %8 {
      %c0_5 = arith.constant 0 : index
      %9 = memref.load %arg1[%c0_5] : memref<1xf32, #tpu.memory_space<smem>>
      %c0_6 = arith.constant 0 : index
      %10 = memref.load %arg2[%c0_6] : memref<1xf32, #tpu.memory_space<smem>>
      %11 = vector.broadcast %9 : f32 to vector<8x1024xf32>
      %12 = arith.mulf %11, %0 : vector<8x1024xf32>
      %cst = arith.constant 0.000000e+00 : f32
      %13 = vector.broadcast %cst : f32 to vector<8x1024xf32>
      %14 = arith.maximumf %12, %13 : vector<8x1024xf32>
      %15 = math.absf %12 : vector<8x1024xf32>
      %cst_7 = arith.constant 0.000000e+00 : f32
      %16 = vector.broadcast %cst_7 : f32 to vector<8x1024xf32>
      %17 = arith.subf %16, %15 : vector<8x1024xf32>
      %18 = math.exp %17 : vector<8x1024xf32>
      %19 = math.log1p %18 : vector<8x1024xf32>
      %20 = arith.addf %14, %19 : vector<8x1024xf32>
      %21 = vector.broadcast %10 : f32 to vector<8x1024xf32>
      %22 = arith.mulf %20, %21 : vector<8x1024xf32>
      %23 = math.tanh %22 : vector<8x1024xf32>
      %24 = arith.mulf %0, %23 : vector<8x1024xf32>
      %c0_8 = arith.constant 0 : index
      %c0_9 = arith.constant 0 : index
      %25 = vector.load %arg5[%c0_8, %c0_9] : memref<8x1024xf32, #tpu.memory_space<vmem>>, vector<8x1024xf32>
      tpu.vector_store %arg5[%c0_8, %c0_9], %24 {strides = array<i32>} : memref<8x1024xf32, #tpu.memory_space<vmem>>, vector<8x1024xf32>,
    } else {
    }
    return
  }
  func.func @transform_0(%arg0: i32) -> i32 {
    %c0_i32 = arith.constant 0 : i32
    %c0_i32_0 = arith.constant 0 : i32
    return %c0_i32 : i32
  }
  func.func @transform_1(%arg0: i32) -> i32 {
    %c0_i32 = arith.constant 0 : i32
    %c0_i32_0 = arith.constant 0 : i32
    return %c0_i32 : i32
  }
  func.func @transform_2(%arg0: i32) -> i32 {
    %c0_i32 = arith.constant 0 : i32
    %c0_i32_0 = arith.constant 0 : i32
    return %c0_i32 : i32
  }
  func.func @transform_3(%arg0: i32) -> (i32, i32) {
    %c0_i32 = arith.constant 0 : i32
    %c0_i32_0 = arith.constant 0 : i32
    return %arg0, %c0_i32 : i32, i32
  }
  func.func @transform_4(%arg0: i32) -> (i32, i32) {
    %c0_i32 = arith.constant 0 : i32
    %c0_i32_0 = arith.constant 0 : i32
    return %arg0, %c0_i32 : i32, i32
  }
}

</mosaic_0001>

<llo_original>
// kernel: tpu_custom_call.1
$region0: #{tpu_custom_call.1}
  #allocation0 [shape = 'u32[]', space=smem, size = 0x4, offset = 0x4, fixed_abs, tag = 'smem constant byte address 0x4 - core index']
  #allocation1 [shape = 'u32[144,128]{1,0:T(1,128)}', space=vmem, size = 0x12000, scoped, tag = 'internal scratch']
  #allocation2 [shape = 'f32[1]{0:T(128)S(6)}', space=smem, size = 0x200, scoped, tag = 'scoped memory for tpu_custom_call.1']
  #allocation3 [shape = 'f32[1]{0:T(128)S(6)}', space=smem, size = 0x200, scoped, tag = 'scoped memory for tpu_custom_call.1']
  #allocation4 [shape = 's32[1]{0:T(128)S(6)}', space=smem, size = 0x200, scoped, tag = 'scoped memory for tpu_custom_call.1']
  %s0 = inlined_call_operand.<no memory space> [shape: f32[1], index: 0, kind: input, shape index: {}]
  %s1 = inlined_call_operand.<no memory space> [shape: f32[1], index: 1, kind: input, shape index: {}]
  %s2 = inlined_call_operand.<no memory space> [shape: s32[1], index: 2, kind: input, shape index: {}]
  %s3 = inlined_call_operand.hbm [shape: f32[8,1024], index: 3, kind: input, shape index: {}]
  %s4 = inlined_call_operand.hbm [shape: f32[8,1024], index: 4, kind: output, shape index: {}]
  %s5 = sld [smem:[#allocation0]]
  $region38: #{tpu_custom_call.1} parent=0
    _
  %s7 = ssub.s32 1, %s5
  %s8 = scalar_select 0, %s7, %s5
  %9 = sst [smem:[#allocation2]] %s0
  %10 = sst [smem:[#allocation3]] %s1
  %11 = sst [smem:[#allocation4]] %s2
  $region1: #{tpu_custom_call.1} parent=0
    #allocation5 [shape = 'u8[32768]{0}', space=vmem, size = 0x8000, scoped, tag = 'input window, operand 3, single buffered']
    #allocation6 [shape = 's32[1]{0}', space=sflag, size = 0x4, scoped, tag = 'scoped memory for tpu_custom_call.1']
    #allocation7 [shape = 's32[1]{0}', space=sflag, size = 0x4, scoped, tag = 'scoped memory for tpu_custom_call.1']
    #allocation8 [shape = 'u8[32768]{0}', space=vmem, size = 0x8000, scoped, tag = 'output window, operand 0, single buffered']
    %12 = vsyncpa [#allocation6], 0
    %13 = vsyncpa [#allocation7], 0
    // Predicated region
    $region2: #{tpu_custom_call.1} parent=1 // pred_check
      _
    $region3: #{tpu_custom_call.1} parent=1 // pred_check_branch
      %15 = sbr.rel (0) target = $region5
    $region4: #{tpu_custom_call.1} parent=1 // pred_region
      _
    $region5: #{tpu_custom_call.1} parent=1 // pred_fallthru
      _
    // Predicated region
    $region6: #{tpu_custom_call.1} parent=1 // pred_check
      _
    $region7: #{tpu_custom_call.1} parent=1 // pred_check_branch
      %17 = sbr.rel (0) target = $region9
    $region8: #{tpu_custom_call.1} parent=1 // pred_region
      _
    $region9: #{tpu_custom_call.1} parent=1 // pred_fallthru
      _
    // Predicated region
    $region10: #{tpu_custom_call.1} parent=1 // pred_check
      _
    $region11: #{tpu_custom_call.1} parent=1 // pred_check_branch
      %19 = sbr.rel (0) target = $region13
    $region12: #{tpu_custom_call.1} parent=1 // pred_region
      _
    $region13: #{tpu_custom_call.1} parent=1 // pred_fallthru
      _
    // Predicated region
    $region14: #{tpu_custom_call.1} parent=1 // pred_check
      _
    $region15: #{tpu_custom_call.1} parent=1 // pred_check_branch
      %21 = sbr.rel (0) target = $region17
    $region16: #{tpu_custom_call.1} parent=1 // pred_region
      %s23 = ssub.s32 1024, 1024
      %24 = vsyncadd [#allocation6], %s23
      %s26 = sshll.u32 [#allocation5], 4
      %s27 = int_to_ptr.vmem [resolvable:$true] %s26
      %29 = dma.hbm_to_vmem [thread:$0]  %s3, 1024, %s27, [#allocation6]
    $region17: #{tpu_custom_call.1} parent=1 // pred_fallthru
      _
    // Predicated region
    $region18: #{tpu_custom_call.1} parent=1 // pred_check
      _
    $region19: #{tpu_custom_call.1} parent=1 // pred_check_branch
      %31 = sbr.rel (0) target = $region21
    $region20: #{tpu_custom_call.1} parent=1 // pred_region
      %32 = dma.done [#allocation6], 1024
    $region21: #{tpu_custom_call.1} parent=1 // pred_fallthru
      _
    %v33 = vld [vmem:[#allocation5] sm:$0xff]
    %v34 = vld [vmem:[#allocation5 + $0x8] sm:$0xff]
    %v35 = vld [vmem:[#allocation5 + $0x10] sm:$0xff]
    %v36 = vld [vmem:[#allocation5 + $0x18] sm:$0xff]
    %v37 = vld [vmem:[#allocation5 + $0x20] sm:$0xff]
    %v38 = vld [vmem:[#allocation5 + $0x28] sm:$0xff]
    %v39 = vld [vmem:[#allocation5 + $0x30] sm:$0xff]
    %v40 = vld [vmem:[#allocation5 + $0x38] sm:$0xff]
    %s41 = sld [smem:[#allocation4]]
    %p42 = scmp.eq.s32.totalorder %s41, 1
    // Predicated region
    $region22: #{tpu_custom_call.1} parent=1 // pred_check
      %p43 = pneg %p42
    $region23: #{tpu_custom_call.1} parent=1 // pred_check_branch
      %45 = sbr.rel (%p43) target = $region25
    $region24: #{tpu_custom_call.1} parent=1 // pred_region
      %v46 = vand.u32 2147483647, %v33
      %v47 = vand.u32 2147483647, %v34
      %v48 = vand.u32 2147483647, %v35
      %v49 = vand.u32 2147483647, %v36
      %v50 = vand.u32 2147483647, %v37
      %v51 = vand.u32 2147483647, %v38
      %v52 = vand.u32 2147483647, %v39
      %v53 = vand.u32 2147483647, %v40
      %v54 = vsub.f32 0.0, %v46
      %v55 = vsub.f32 0.0, %v47
      %v56 = vsub.f32 0.0, %v48
      %v57 = vsub.f32 0.0, %v49
      %v58 = vsub.f32 0.0, %v50
      %v59 = vsub.f32 0.0, %v51
      %v60 = vsub.f32 0.0, %v52
      %v61 = vsub.f32 0.0, %v53
      %v62 = vmul.f32 %v54, 1.442695
      %v63 = vpow.pop %v62
      %v64 = vmul.f32 %v55, 1.442695
      %v65 = vpow.pop %v64
      %v66 = vmul.f32 %v56, 1.442695
      %v67 = vpow.pop %v66
      %v68 = vmul.f32 %v57, 1.442695
      %v69 = vpow.pop %v68
      %v70 = vmul.f32 %v58, 1.442695
      %v71 = vpow.pop %v70
      %v72 = vmul.f32 %v59, 1.442695
      %v73 = vpow.pop %v72
      %v74 = vmul.f32 %v60, 1.442695
      %v75 = vpow.pop %v74
      %v76 = vmul.f32 %v61, 1.442695
      %v77 = vpow.pop %v76
      %v78 = vmul.f32 %v63, %v63
      %v79 = vmul.f32 %v65, %v65
      %v80 = vmul.f32 %v67, %v67
      %v81 = vmul.f32 %v69, %v69
      %v82 = vmul.f32 %v71, %v71
      %v83 = vmul.f32 %v73, %v73
      %v84 = vmul.f32 %v75, %v75
      %v85 = vmul.f32 %v77, %v77
      %vm86 = vcmp.ge.f32.partialorder %v33, 0.0
      %vm87 = vcmp.ge.f32.partialorder %v34, 0.0
      %vm88 = vcmp.ge.f32.partialorder %v35, 0.0
      %vm89 = vcmp.ge.f32.partialorder %v36, 0.0
      %vm90 = vcmp.ge.f32.partialorder %v37, 0.0
      %vm91 = vcmp.ge.f32.partialorder %v38, 0.0
      %vm92 = vcmp.ge.f32.partialorder %v39, 0.0
      %vm93 = vcmp.ge.f32.partialorder %v40, 0.0
      %v94 = vmul.f32 %v63, 2.0
      %v95 = vmul.f32 %v65, 2.0
      %v96 = vmul.f32 %v67, 2.0
      %v97 = vmul.f32 %v69, 2.0
      %v98 = vmul.f32 %v71, 2.0
      %v99 = vmul.f32 %v73, 2.0
      %v100 = vmul.f32 %v75, 2.0
      %v101 = vmul.f32 %v77, 2.0
      %v102 = vadd.f32 %v94, 1.0
      %v103 = vadd.f32 %v95, 1.0
      %v104 = vadd.f32 %v96, 1.0
      %v105 = vadd.f32 %v97, 1.0
      %v106 = vadd.f32 %v98, 1.0
      %v107 = vadd.f32 %v99, 1.0
      %v108 = vadd.f32 %v100, 1.0
      %v109 = vadd.f32 %v101, 1.0
      %v110 = vadd.f32 %v78, %v94
      %v111 = vadd.f32 %v79, %v95
      %v112 = vadd.f32 %v80, %v96
      %v113 = vadd.f32 %v81, %v97
      %v114 = vadd.f32 %v82, %v98
      %v115 = vadd.f32 %v83, %v99
      %v116 = vadd.f32 %v84, %v100
      %v117 = vadd.f32 %v85, %v101
      %v118 = vsel %vm86, %v102, %v110
      %v119 = vsel %vm87, %v103, %v111
      %v120 = vsel %vm88, %v104, %v112
      %v121 = vsel %vm89, %v105, %v113
      %v122 = vsel %vm90, %v106, %v114
      %v123 = vsel %vm91, %v107, %v115
      %v124 = vsel %vm92, %v108, %v116
      %v125 = vsel %vm93, %v109, %v117
      %v126 = vmul.f32 %v78, 2.0
      %v127 = vmul.f32 %v79, 2.0
      %v128 = vmul.f32 %v80, 2.0
      %v129 = vmul.f32 %v81, 2.0
      %v130 = vmul.f32 %v82, 2.0
      %v131 = vmul.f32 %v83, 2.0
      %v132 = vmul.f32 %v84, 2.0
      %v133 = vmul.f32 %v85, 2.0
      %v134 = vadd.f32 %v126, %v94
      %v135 = vadd.f32 %v127, %v95
      %v136 = vadd.f32 %v128, %v96
      %v137 = vadd.f32 %v129, %v97
      %v138 = vadd.f32 %v130, %v98
      %v139 = vadd.f32 %v131, %v99
      %v140 = vadd.f32 %v132, %v100
      %v141 = vadd.f32 %v133, %v101
      %v142 = vadd.f32 %v134, 1.0
      %v143 = vadd.f32 %v135, 1.0
      %v144 = vadd.f32 %v136, 1.0
      %v145 = vadd.f32 %v137, 1.0
      %v146 = vadd.f32 %v138, 1.0
      %v147 = vadd.f32 %v139, 1.0
      %v148 = vadd.f32 %v140, 1.0
      %v149 = vadd.f32 %v141, 1.0
      %v150 = vadd.f32 %v110, 2.0
      %v151 = vadd.f32 %v111, 2.0
      %v152 = vadd.f32 %v112, 2.0
      %v153 = vadd.f32 %v113, 2.0
      %v154 = vadd.f32 %v114, 2.0
      %v155 = vadd.f32 %v115, 2.0
      %v156 = vadd.f32 %v116, 2.0
      %v157 = vadd.f32 %v117, 2.0
      %v158 = vsel %vm86, %v142, %v150
      %v159 = vsel %vm87, %v143, %v151
      %v160 = vsel %vm88, %v144, %v152
      %v161 = vsel %vm89, %v145, %v153
      %v162 = vsel %vm90, %v146, %v154
      %v163 = vsel %vm91, %v147, %v155
      %v164 = vsel %vm92, %v148, %v156
      %v165 = vsel %vm93, %v149, %v157
      %v166 = vrcp.pop %v158
      %v167 = vmul.f32 %v118, %v166
      %v168 = vrcp.pop %v159
      %v169 = vmul.f32 %v119, %v168
      %v170 = vrcp.pop %v160
      %v171 = vmul.f32 %v120, %v170
      %v172 = vrcp.pop %v161
      %v173 = vmul.f32 %v121, %v172
      %v174 = vrcp.pop %v162
      %v175 = vmul.f32 %v122, %v174
      %v176 = vrcp.pop %v163
      %v177 = vmul.f32 %v123, %v176
      %v178 = vrcp.pop %v164
      %v179 = vmul.f32 %v124, %v178
      %v180 = vrcp.pop %v165
      %v181 = vmul.f32 %v125, %v180
      %v182 = vmul.f32 %v33, %v167
      %v183 = vmul.f32 %v34, %v169
      %v184 = vmul.f32 %v35, %v171
      %v185 = vmul.f32 %v36, %v173
      %v186 = vmul.f32 %v37, %v175
      %v187 = vmul.f32 %v38, %v177
      %v188 = vmul.f32 %v39, %v179
      %v189 = vmul.f32 %v40, %v181
      %190 = vst [vmem:[#allocation8] sm:$0xff] %v182
      %191 = vst [vmem:[#allocation8 + $0x8] sm:$0xff] %v183
      %192 = vst [vmem:[#allocation8 + $0x10] sm:$0xff] %v184
      %193 = vst [vmem:[#allocation8 + $0x18] sm:$0xff] %v185
      %194 = vst [vmem:[#allocation8 + $0x20] sm:$0xff] %v186
      %195 = vst [vmem:[#allocation8 + $0x28] sm:$0xff] %v187
      %196 = vst [vmem:[#allocation8 + $0x30] sm:$0xff] %v188
      %197 = vst [vmem:[#allocation8 + $0x38] sm:$0xff] %v189
    $region25: #{tpu_custom_call.1} parent=1 // pred_fallthru
      _
    %s198 = sld [smem:[#allocation4]]
    %p199 = scmp.eq.s32.totalorder %s198, 0
    // Predicated region
    $region26: #{tpu_custom_call.1} parent=1 // pred_check
      %p200 = pneg %p199
    $region27: #{tpu_custom_call.1} parent=1 // pred_check_branch
      %202 = sbr.rel (%p200) target = $region29
    $region28: #{tpu_custom_call.1} parent=1 // pred_region
      %s203 = sld [smem:[#allocation2]]
      %s204 = sld [smem:[#allocation3]]
      %v205 = vstv %s203
      %v206 = vmul.f32 %v205, %v33
      %v207 = vmul.f32 %v205, %v34
      %v208 = vmul.f32 %v205, %v35
      %v209 = vmul.f32 %v205, %v36
      %v210 = vmul.f32 %v205, %v37
      %v211 = vmul.f32 %v205, %v38
      %v212 = vmul.f32 %v205, %v39
      %v213 = vmul.f32 %v205, %v40
      %v214 = vmax.f32 %v206, 0.0
      %v215 = vmax.f32 %v207, 0.0
      %v216 = vmax.f32 %v208, 0.0
      %v217 = vmax.f32 %v209, 0.0
      %v218 = vmax.f32 %v210, 0.0
      %v219 = vmax.f32 %v211, 0.0
      %v220 = vmax.f32 %v212, 0.0
      %v221 = vmax.f32 %v213, 0.0
      %v222 = vand.u32 2147483647, %v206
      %v223 = vand.u32 2147483647, %v207
      %v224 = vand.u32 2147483647, %v208
      %v225 = vand.u32 2147483647, %v209
      %v226 = vand.u32 2147483647, %v210
      %v227 = vand.u32 2147483647, %v211
      %v228 = vand.u32 2147483647, %v212
      %v229 = vand.u32 2147483647, %v213
      %v230 = vsub.f32 0.0, %v222
      %v231 = vsub.f32 0.0, %v223
      %v232 = vsub.f32 0.0, %v224
      %v233 = vsub.f32 0.0, %v225
      %v234 = vsub.f32 0.0, %v226
      %v235 = vsub.f32 0.0, %v227
      %v236 = vsub.f32 0.0, %v228
      %v237 = vsub.f32 0.0, %v229
      %v238 = vmul.f32 %v230, 1.442695
      %v239 = vpow.pop %v238
      %v240 = vmul.f32 %v231, 1.442695
      %v241 = vpow.pop %v240
      %v242 = vmul.f32 %v232, 1.442695
      %v243 = vpow.pop %v242
      %v244 = vmul.f32 %v233, 1.442695
      %v245 = vpow.pop %v244
      %v246 = vmul.f32 %v234, 1.442695
      %v247 = vpow.pop %v246
      %v248 = vmul.f32 %v235, 1.442695
      %v249 = vpow.pop %v248
      %v250 = vmul.f32 %v236, 1.442695
      %v251 = vpow.pop %v250
      %v252 = vmul.f32 %v237, 1.442695
      %v253 = vpow.pop %v252
      %v254 = vadd.f32 %v239, 1.0
      %v255 = vlog2.pop %v254
      %v256 = vmul.f32 %v255, 0.6931472
      %v257 = vmul.f32 -0.5, %v239
      %v258 = vadd.f32 %v257, 1.0
      %v259 = vmul.f32 %v258, %v239
      %v260 = vand.u32 2147483647, %v239
      %vm261 = vcmp.lt.f32.partialorder %v260, 0.0004427343
      %v262 = vsel %vm261, %v259, %v256
      %v263 = vadd.f32 %v241, 1.0
      %v264 = vlog2.pop %v263
      %v265 = vmul.f32 %v264, 0.6931472
      %v266 = vmul.f32 -0.5, %v241
      %v267 = vadd.f32 %v266, 1.0
      %v268 = vmul.f32 %v267, %v241
      %v269 = vand.u32 2147483647, %v241
      %vm270 = vcmp.lt.f32.partialorder %v269, 0.0004427343
      %v271 = vsel %vm270, %v268, %v265
      %v272 = vadd.f32 %v243, 1.0
      %v273 = vlog2.pop %v272
      %v274 = vmul.f32 %v273, 0.6931472
      %v275 = vmul.f32 -0.5, %v243
      %v276 = vadd.f32 %v275, 1.0
      %v277 = vmul.f32 %v276, %v243
      %v278 = vand.u32 2147483647, %v243
      %vm279 = vcmp.lt.f32.partialorder %v278, 0.0004427343
      %v280 = vsel %vm279, %v277, %v274
      %v281 = vadd.f32 %v245, 1.0
      %v282 = vlog2.pop %v281
      %v283 = vmul.f32 %v282, 0.6931472
      %v284 = vmul.f32 -0.5, %v245
      %v285 = vadd.f32 %v284, 1.0
      %v286 = vmul.f32 %v285, %v245
      %v287 = vand.u32 2147483647, %v245
      %vm288 = vcmp.lt.f32.partialorder %v287, 0.0004427343
      %v289 = vsel %vm288, %v286, %v283
      %v290 = vadd.f32 %v247, 1.0
      %v291 = vlog2.pop %v290
      %v292 = vmul.f32 %v291, 0.6931472
      %v293 = vmul.f32 -0.5, %v247
      %v294 = vadd.f32 %v293, 1.0
      %v295 = vmul.f32 %v294, %v247
      %v296 = vand.u32 2147483647, %v247
      %vm297 = vcmp.lt.f32.partialorder %v296, 0.0004427343
      %v298 = vsel %vm297, %v295, %v292
      %v299 = vadd.f32 %v249, 1.0
      %v300 = vlog2.pop %v299
      %v301 = vmul.f32 %v300, 0.6931472
      %v302 = vmul.f32 -0.5, %v249
      %v303 = vadd.f32 %v302, 1.0
      %v304 = vmul.f32 %v303, %v249
      %v305 = vand.u32 2147483647, %v249
      %vm306 = vcmp.lt.f32.partialorder %v305, 0.0004427343
      %v307 = vsel %vm306, %v304, %v301
      %v308 = vadd.f32 %v251, 1.0
      %v309 = vlog2.pop %v308
      %v310 = vmul.f32 %v309, 0.6931472
      %v311 = vmul.f32 -0.5, %v251
      %v312 = vadd.f32 %v311, 1.0
      %v313 = vmul.f32 %v312, %v251
      %v314 = vand.u32 2147483647, %v251
      %vm315 = vcmp.lt.f32.partialorder %v314, 0.0004427343
      %v316 = vsel %vm315, %v313, %v310
      %v317 = vadd.f32 %v253, 1.0
      %v318 = vlog2.pop %v317
      %v319 = vmul.f32 %v318, 0.6931472
      %v320 = vmul.f32 -0.5, %v253
      %v321 = vadd.f32 %v320, 1.0
      %v322 = vmul.f32 %v321, %v253
      %v323 = vand.u32 2147483647, %v253
      %vm324 = vcmp.lt.f32.partialorder %v323, 0.0004427343
      %v325 = vsel %vm324, %v322, %v319
      %v326 = vadd.f32 %v214, %v262
      %v327 = vadd.f32 %v215, %v271
      %v328 = vadd.f32 %v216, %v280
      %v329 = vadd.f32 %v217, %v289
      %v330 = vadd.f32 %v218, %v298
      %v331 = vadd.f32 %v219, %v307
      %v332 = vadd.f32 %v220, %v316
      %v333 = vadd.f32 %v221, %v325
      %v334 = vstv %s204
      %v335 = vmul.f32 %v326, %v334
      %v336 = vmul.f32 %v327, %v334
      %v337 = vmul.f32 %v328, %v334
      %v338 = vmul.f32 %v329, %v334
      %v339 = vmul.f32 %v330, %v334
      %v340 = vmul.f32 %v331, %v334
      %v341 = vmul.f32 %v332, %v334
      %v342 = vmul.f32 %v333, %v334
      %v343 = vtanh.pop %v335
      %v344 = vtanh.pop %v336
      %v345 = vtanh.pop %v337
      %v346 = vtanh.pop %v338
      %v347 = vtanh.pop %v339
      %v348 = vtanh.pop %v340
      %v349 = vtanh.pop %v341
      %v350 = vtanh.pop %v342
      %v351 = vmul.f32 %v33, %v343
      %v352 = vmul.f32 %v34, %v344
      %v353 = vmul.f32 %v35, %v345
      %v354 = vmul.f32 %v36, %v346
      %v355 = vmul.f32 %v37, %v347
      %v356 = vmul.f32 %v38, %v348
      %v357 = vmul.f32 %v39, %v349
      %v358 = vmul.f32 %v40, %v350
      %359 = vst [vmem:[#allocation8] sm:$0xff] %v351
      %360 = vst [vmem:[#allocation8 + $0x8] sm:$0xff] %v352
      %361 = vst [vmem:[#allocation8 + $0x10] sm:$0xff] %v353
      %362 = vst [vmem:[#allocation8 + $0x18] sm:$0xff] %v354
      %363 = vst [vmem:[#allocation8 + $0x20] sm:$0xff] %v355
      %364 = vst [vmem:[#allocation8 + $0x28] sm:$0xff] %v356
      %365 = vst [vmem:[#allocation8 + $0x30] sm:$0xff] %v357
      %366 = vst [vmem:[#allocation8 + $0x38] sm:$0xff] %v358
    $region29: #{tpu_custom_call.1} parent=1 // pred_fallthru
      _
    // Predicated region
    $region30: #{tpu_custom_call.1} parent=1 // pred_check
      _
    $region31: #{tpu_custom_call.1} parent=1 // pred_check_branch
      %368 = sbr.rel (0) target = $region33
    $region32: #{tpu_custom_call.1} parent=1 // pred_region
      %s370 = ssub.s32 1024, 1024
      %371 = vsyncadd [#allocation7], %s370
      %s373 = sshll.u32 [#allocation8], 4
      %s374 = int_to_ptr.vmem [resolvable:$true] %s373
      %376 = dma.vmem_to_hbm [thread:$0]  %s374, 1024, %s4, [#allocation7]
    $region33: #{tpu_custom_call.1} parent=1 // pred_fallthru
      _
    // Predicated region
    $region34: #{tpu_custom_call.1} parent=1 // pred_check
      _
    $region35: #{tpu_custom_call.1} parent=1 // pred_check_branch
      %378 = sbr.rel (0) target = $region37
    $region36: #{tpu_custom_call.1} parent=1 // pred_region
      %379 = dma.done [#allocation7], 1024
    $region37: #{tpu_custom_call.1} parent=1 // pred_fallthru
      _
    %380 = vsyncpa [#allocation6], 1
    %381 = vsyncpa [#allocation7], 1

</llo_original>
